<compile_context>
chip_gen: v5e
topology: v5e:2x2
jax: 0.10.0
libtpu: 0.0.40
codegen_flags: <defaults>
</compile_context>

<pallas_src>
import jax
import jax.numpy as jnp
from jax.experimental import pallas as pl
from jax.experimental.pallas import tpu as pltpu

NUM_CLASSES = 9
HIDDEN1 = 256
HIDDEN2 = 64
OUT_PAD = 128          # lane-dense padded width of the final Linear output


def _round_up(x, m):
    return ((x + m - 1) // m) * m


def _vmem_capacity_bytes():
    """Per-generation VMEM capacity (128 MiB v5e/v6e, 64 MiB v7x)."""
    try:
        cap = getattr(pltpu.get_tpu_info(), "vmem_capacity_bytes", None)
        if cap:
            return int(cap)
    except Exception:
        pass
    return 64 * 1024 * 1024      # conservative fallback, fits every generation


def _weight_bytes(C):
    """Resident f32 weight/bias bytes (W3/b3 already padded to OUT_PAD)."""
    return 4 * (C * HIDDEN1 + HIDDEN1 + HIDDEN1 * HIDDEN2 + HIDDEN2
                + HIDDEN2 * OUT_PAD + OUT_PAD)


def _padded_row_bytes(C, HW, itemsize):
    """VMEM footprint of one batch row of a (TB, C, HW) block.

    C maps to sublanes (sub-32-bit dtypes pack along sublanes), HW maps to the
    128-lane axis (padded up to 128)."""
    sublane_pack = max(1, 32 // (8 * itemsize)) * 8   # 8 for f32, 16 for bf16
    return _round_up(C, sublane_pack) * _round_up(HW, 128) * itemsize


def _pick_batch_tile(B, C, HW, itemsize):
    """Largest batch tile whose double-buffered feature tile fits VMEM."""
    budget = int(_vmem_capacity_bytes() * 0.70) - 2 * _weight_bytes(C)
    row = _padded_row_bytes(C, HW, itemsize)
    fit = max(1, budget // (2 * row))                 # double-buffered input
    if fit >= B:
        # The whole batch would fit in one step.  Still split into two grid
        # steps when the batch is big enough so dimension_semantics=
        # ("parallel",) can shard the batch across v7x's two TensorCores.
        if B >= 16:
            return _round_up(pl.cdiv(B, 2), 8)
        return B
    if fit >= 256:
        return (fit // 128) * 128     # full 128-row MXU tiles (helps v5e)
    return max(8, (fit // 8) * 8)     # 8-aligned so the (TB, 128) out block tiles


def classifier_head_kernel(feat_ref, w1_ref, b1_ref, w2_ref, b2_ref,
                           w3_ref, b3_ref, out_ref):
    # feat_ref: [TB, C, HW] in the backbone's dtype (bf16 recommended), native
    # NCHW layout: channels on sublanes, spatial on the 128-lane axis.
    feat = feat_ref[...]

    # adaptive_avg_pool2d(1,1) + flatten.  Pool as a plain SUM over the spatial
    # (lane) axis, upcast to f32 before the reduce (v5e has no bf16 VPU).  The
    # 1/(H*W) mean factor is folded into W1 by the wrapper.
    pooled = jnp.sum(feat.astype(jnp.float32), axis=-1)             # [TB, C]

    # Linear(C, 256) (W1 pre-scaled by 1/(H*W)) + ReLU.  Weights are resident
    # in VMEM (constant index_map) so they stay f32 for accuracy.
    h = jnp.dot(pooled, w1_ref[...],
                preferred_element_type=jnp.float32) + b1_ref[...]
    h = jnp.maximum(h, 0.0)

    # Dropout(0.3): identity in eval/inference mode.

    # Linear(256, 64) + ReLU
    h = jnp.dot(h, w2_ref[...],
                preferred_element_type=jnp.float32) + b2_ref[...]
    h = jnp.maximum(h, 0.0)

    # Linear(64, 9), zero-padded to 128 outputs for a lane-dense full store.
    out_ref[...] = jnp.dot(h, w3_ref[...],
                           preferred_element_type=jnp.float32) + b3_ref[...]


def _call_head(feat, w1s, b1, w2, b2, w3p, b3p, TB, vmem_limit,
               single_buffer_weights):
    B, C, HW = feat.shape
    grid = (pl.cdiv(B, TB),)      # ragged last tile handled by Pallas masking

    def wspec(shape):
        idx = lambda i: (0,) * len(shape)
        if single_buffer_weights:
            # Constant index_map -> fetched once; single-buffer to free VMEM
            # for a larger feature tile (matters most on v7x's 64 MiB).
            return pl.BlockSpec(shape, idx, pipeline_mode=pl.Buffered(1))
        return pl.BlockSpec(shape, idx)

    return pl.pallas_call(
        classifier_head_kernel,
        out_shape=jax.ShapeDtypeStruct((B, OUT_PAD), jnp.float32),
        grid_spec=pltpu.PrefetchScalarGridSpec(
            num_scalar_prefetch=0,
            grid=grid,
            in_specs=[
                pl.BlockSpec((TB, C, HW), lambda i: (i, 0, 0)),
                wspec((C, HIDDEN1)),
                wspec((1, HIDDEN1)),
                wspec((HIDDEN1, HIDDEN2)),
                wspec((1, HIDDEN2)),
                wspec((HIDDEN2, OUT_PAD)),
                wspec((1, OUT_PAD)),
            ],
            out_specs=pl.BlockSpec((TB, OUT_PAD), lambda i: (i, 0)),
        ),
        compiler_params=pltpu.CompilerParams(
            dimension_semantics=("parallel",),
            vmem_limit_bytes=vmem_limit,
        ),
    )(feat, w1s, b1, w2, b2, w3p, b3p)


def single_classifier_forward(features_nchw, params):
    """features_nchw: [B, C, H, W] backbone feature maps (any float dtype).

    Feed bf16 features straight from the backbone to halve the dominant HBM
    traffic; this wrapper adds no transpose / pad / cast pass over the features.
    """
    B, C, H, W = features_nchw.shape
    HW = H * W
    w1t, b1, w2t, b2, w3t, b3 = params

    # Free reshape (merges trailing contiguous dims); keeps native NCHW layout.
    feat = features_nchw.reshape(B, C, HW)

    # Fold the average-pool scale into W1 (kernel pools with a plain sum).
    w1_scaled = w1t.astype(jnp.float32) * (1.0 / float(HW))

    # Zero-pad the final Linear 9 -> 128 outputs (lane-dense, unmasked store).
    w3p = jnp.zeros((HIDDEN2, OUT_PAD), jnp.float32).at[:, :NUM_CLASSES].set(w3t)
    b3p = jnp.zeros((1, OUT_PAD), jnp.float32).at[:, :NUM_CLASSES].set(b3)

    itemsize = jnp.dtype(feat.dtype).itemsize
    TB = _pick_batch_tile(B, C, HW, itemsize)

    vmem_need = (2 * TB * _padded_row_bytes(C, HW, itemsize)    # feature tiles
                 + 2 * _weight_bytes(C)                         # weights/biases
                 + 2 * TB * OUT_PAD * 4)                        # output tiles
    vmem_limit = min(_vmem_capacity_bytes(),
                     max(vmem_need + (8 << 20), 32 << 20))

    args = (feat, w1_scaled, b1, w2t, b2, w3p, b3p)
    try:
        out = _call_head(*args, TB=TB, vmem_limit=vmem_limit,
                         single_buffer_weights=True)
        out = jax.block_until_ready(out)
    except Exception:
        # Fallback if pl.Buffered(1) is unsupported on this JAX/Mosaic build:
        # identical kernel with default double-buffered weight blocks.
        out = _call_head(*args, TB=TB, vmem_limit=vmem_limit,
                         single_buffer_weights=False)
    return out[:, :NUM_CLASSES]


def init_params(key, feature_dim):
    """PyTorch-style (uniform +-1/sqrt(fan_in)) Linear init.

    Weights are stored pre-transposed ([in, out]) so the kernel does x @ W.
    Biases are stored as [1, out] rows for clean broadcasting on TPU.
    """
    def linear(key, fan_in, fan_out):
        kw, kb = jax.random.split(key)
        bound = 1.0 / jnp.sqrt(float(fan_in))
        w = jax.random.uniform(kw, (fan_in, fan_out), jnp.float32, -bound, bound)
        b = jax.random.uniform(kb, (1, fan_out), jnp.float32, -bound, bound)
        return w, b

    k1, k2, k3 = jax.random.split(key, 3)
    w1t, b1 = linear(k1, feature_dim, HIDDEN1)
    w2t, b2 = linear(k2, HIDDEN1, HIDDEN2)
    w3t, b3 = linear(k3, HIDDEN2, NUM_CLASSES)
    return (w1t, b1, w2t, b2, w3t, b3)


def reference_forward(features_nchw, params):
    w1t, b1, w2t, b2, w3t, b3 = params
    pooled = jnp.mean(features_nchw, axis=(2, 3))
    h = jnp.maximum(pooled @ w1t + b1, 0.0)
    h = jnp.maximum(h @ w2t + b2, 0.0)
    return h @ w3t + b3


if __name__ == "__main__":
    # Small synthetic stand-in for the backbone's final feature map:
    # batch=2, 128 channels, 4x4 spatial.  The backbone emits bf16 features.
    B, C, H, W = 2, 128, 4, 4

    key = jax.random.PRNGKey(0)
    k_feat, k_param = jax.random.split(key)
    features = jax.random.normal(k_feat, (B, C, H, W), dtype=jnp.float32)
    features_bf16 = features.astype(jnp.bfloat16)     # backbone output dtype
    params = init_params(k_param, C)

    out = single_classifier_forward(features_bf16, params)
    out = jax.block_until_ready(out)

    # Reference on the same (bf16-rounded) features with all-f32 math.
    ref = reference_forward(features_bf16.astype(jnp.float32), params)

    assert out.shape == (B, NUM_CLASSES)
    max_err = float(jnp.max(jnp.abs(out - ref)))
    assert jnp.allclose(out, ref, atol=1e-3, rtol=1e-3), max_err

    print("KERNEL_OK")
</pallas_src>

<mosaic_0001>
module attributes {stable_mosaic.version = 11 : i64} {
  func.func @classifier_head_kernel(%arg0: i32, %arg1: memref<2x128x16xbf16, #tpu.memory_space<vmem>>, %arg2: memref<128x256xf32, #tpu.memory_space<vmem>>, %arg3: memref<1x256xf32, #tpu.memory_space<vmem>>, %arg4: memref<256x64xf32, #tpu.memory_space<vmem>>, %arg5: memref<1x64xf32, #tpu.memory_space<vmem>>, %arg6: memref<64x128xf32, #tpu.memory_space<vmem>>, %arg7: memref<1x128xf32, #tpu.memory_space<vmem>>, %arg8: memref<2x128xf32, #tpu.memory_space<vmem>>) attributes {dimension_semantics = [#tpu.dimension_semantics<parallel>], iteration_bounds = array<i64: 1>, scalar_prefetch = 0 : i64, scratch_operands = 0 : i64, tpu.core_type = #tpu.core_type<tc>, window_params = [{transform_indices = @transform_0, window_bounds = array<i64: 2, 128, 16>}, {pipeline_mode = #tpu.pipeline_mode<synchronous>, transform_indices = @transform_1, window_bounds = array<i64: 128, 256>}, {pipeline_mode = #tpu.pipeline_mode<synchronous>, transform_indices = @transform_2, window_bounds = array<i64: 1, 256>}, {pipeline_mode = #tpu.pipeline_mode<synchronous>, transform_indices = @transform_3, window_bounds = array<i64: 256, 64>}, {pipeline_mode = #tpu.pipeline_mode<synchronous>, transform_indices = @transform_4, window_bounds = array<i64: 1, 64>}, {pipeline_mode = #tpu.pipeline_mode<synchronous>, transform_indices = @transform_5, window_bounds = array<i64: 64, 128>}, {pipeline_mode = #tpu.pipeline_mode<synchronous>, transform_indices = @transform_6, window_bounds = array<i64: 1, 128>}, {transform_indices = @transform_7, window_bounds = array<i64: 2, 128>}]} {
    %c0 = arith.constant 0 : index
    %c0_0 = arith.constant 0 : index
    %c0_1 = arith.constant 0 : index
    %0 = vector.load %arg1[%c0, %c0_0, %c0_1] : memref<2x128x16xbf16, #tpu.memory_space<vmem>>, vector<2x128x16xbf16>
    %1 = arith.extf %0 : vector<2x128x16xbf16> to vector<2x128x16xf32>
    %cst = arith.constant dense<0.000000e+00> : vector<2x128xf32>
    %2 = vector.multi_reduction <add>, %1, %cst [2] : vector<2x128x16xf32> to vector<2x128xf32>
    %c0_2 = arith.constant 0 : index
    %c0_3 = arith.constant 0 : index
    %3 = vector.load %arg2[%c0_2, %c0_3] : memref<128x256xf32, #tpu.memory_space<vmem>>, vector<128x256xf32>
    %cst_4 = arith.constant dense<0.000000e+00> : vector<2x256xf32>
    %4 = tpu.matmul %2, %3, %cst_4 {dimension_numbers = #tpu.dot_dimension_numbers<[1], [0], [0], [1], [0, 0, 1, 1], [], []>} : vector<2x128xf32>, vector<128x256xf32>, vector<2x256xf32> -> vector<2x256xf32>
    %c0_5 = arith.constant 0 : index
    %c0_6 = arith.constant 0 : index
    %5 = vector.load %arg3[%c0_5, %c0_6] : memref<1x256xf32, #tpu.memory_space<vmem>>, vector<1x256xf32>
    %6 = vector.broadcast %5 : vector<1x256xf32> to vector<2x256xf32>
    %7 = arith.addf %4, %6 : vector<2x256xf32>
    %cst_7 = arith.constant 0.000000e+00 : f32
    %8 = vector.broadcast %cst_7 : f32 to vector<2x256xf32>
    %9 = arith.maximumf %7, %8 : vector<2x256xf32>
    %c0_8 = arith.constant 0 : index
    %c0_9 = arith.constant 0 : index
    %10 = vector.load %arg4[%c0_8, %c0_9] : memref<256x64xf32, #tpu.memory_space<vmem>>, vector<256x64xf32>
    %cst_10 = arith.constant dense<0.000000e+00> : vector<2x64xf32>
    %11 = tpu.matmul %9, %10, %cst_10 {dimension_numbers = #tpu.dot_dimension_numbers<[1], [0], [0], [1], [0, 0, 1, 1], [], []>} : vector<2x256xf32>, vector<256x64xf32>, vector<2x64xf32> -> vector<2x64xf32>
    %c0_11 = arith.constant 0 : index
    %c0_12 = arith.constant 0 : index
    %12 = vector.load %arg5[%c0_11, %c0_12] : memref<1x64xf32, #tpu.memory_space<vmem>>, vector<1x64xf32>
    %13 = vector.broadcast %12 : vector<1x64xf32> to vector<2x64xf32>
    %14 = arith.addf %11, %13 : vector<2x64xf32>
    %cst_13 = arith.constant 0.000000e+00 : f32
    %15 = vector.broadcast %cst_13 : f32 to vector<2x64xf32>
    %16 = arith.maximumf %14, %15 : vector<2x64xf32>
    %c0_14 = arith.constant 0 : index
    %c0_15 = arith.constant 0 : index
    %17 = vector.load %arg6[%c0_14, %c0_15] : memref<64x128xf32, #tpu.memory_space<vmem>>, vector<64x128xf32>
    %cst_16 = arith.constant dense<0.000000e+00> : vector<2x128xf32>
    %18 = tpu.matmul %16, %17, %cst_16 {dimension_numbers = #tpu.dot_dimension_numbers<[1], [0], [0], [1], [0, 0, 1, 1], [], []>} : vector<2x64xf32>, vector<64x128xf32>, vector<2x128xf32> -> vector<2x128xf32>
    %c0_17 = arith.constant 0 : index
    %c0_18 = arith.constant 0 : index
    %19 = vector.load %arg7[%c0_17, %c0_18] : memref<1x128xf32, #tpu.memory_space<vmem>>, vector<1x128xf32>
    %20 = vector.broadcast %19 : vector<1x128xf32> to vector<2x128xf32>
    %21 = arith.addf %18, %20 : vector<2x128xf32>
    %c0_19 = arith.constant 0 : index
    %c0_20 = arith.constant 0 : index
    %22 = vector.load %arg8[%c0_19, %c0_20] : memref<2x128xf32, #tpu.memory_space<vmem>>, vector<2x128xf32>
    tpu.vector_store %arg8[%c0_19, %c0_20], %21 {strides = array<i32>} : memref<2x128xf32, #tpu.memory_space<vmem>>, vector<2x128xf32>,
    return
  }
  func.func @transform_0(%arg0: i32) -> (i32, i32, i32) {
    %c0_i32 = arith.constant 0 : i32
    %c0_i32_0 = arith.constant 0 : i32
    %c0_i32_1 = arith.constant 0 : i32
    return %arg0, %c0_i32, %c0_i32_0 : i32, i32, i32
  }
  func.func @transform_1(%arg0: i32) -> (i32, i32) {
    %c0_i32 = arith.constant 0 : i32
    %c0_i32_0 = arith.constant 0 : i32
    %c0_i32_1 = arith.constant 0 : i32
    return %c0_i32, %c0_i32_0 : i32, i32
  }
  func.func @transform_2(%arg0: i32) -> (i32, i32) {
    %c0_i32 = arith.constant 0 : i32
    %c0_i32_0 = arith.constant 0 : i32
    %c0_i32_1 = arith.constant 0 : i32
    return %c0_i32, %c0_i32_0 : i32, i32
  }
  func.func @transform_3(%arg0: i32) -> (i32, i32) {
    %c0_i32 = arith.constant 0 : i32
    %c0_i32_0 = arith.constant 0 : i32
    %c0_i32_1 = arith.constant 0 : i32
    return %c0_i32, %c0_i32_0 : i32, i32
  }
  func.func @transform_4(%arg0: i32) -> (i32, i32) {
    %c0_i32 = arith.constant 0 : i32
    %c0_i32_0 = arith.constant 0 : i32
    %c0_i32_1 = arith.constant 0 : i32
    return %c0_i32, %c0_i32_0 : i32, i32
  }
  func.func @transform_5(%arg0: i32) -> (i32, i32) {
    %c0_i32 = arith.constant 0 : i32
    %c0_i32_0 = arith.constant 0 : i32
    %c0_i32_1 = arith.constant 0 : i32
    return %c0_i32, %c0_i32_0 : i32, i32
  }
  func.func @transform_6(%arg0: i32) -> (i32, i32) {
    %c0_i32 = arith.constant 0 : i32
    %c0_i32_0 = arith.constant 0 : i32
    %c0_i32_1 = arith.constant 0 : i32
    return %c0_i32, %c0_i32_0 : i32, i32
  }
  func.func @transform_7(%arg0: i32) -> (i32, i32) {
    %c0_i32 = arith.constant 0 : i32
    %c0_i32_0 = arith.constant 0 : i32
    return %arg0, %c0_i32 : i32, i32
  }
}

module attributes {stable_mosaic.version = 11 : i64} {
  func.func @classifier_head_kernel(%arg0: i32, %arg1: memref<2x128x16xbf16, #tpu.memory_space<vmem>>, %arg2: memref<128x256xf32, #tpu.memory_space<vmem>>, %arg3: memref<1x256xf32, #tpu.memory_space<vmem>>, %arg4: memref<256x64xf32, #tpu.memory_space<vmem>>, %arg5: memref<1x64xf32, #tpu.memory_space<vmem>>, %arg6: memref<64x128xf32, #tpu.memory_space<vmem>>, %arg7: memref<1x128xf32, #tpu.memory_space<vmem>>, %arg8: memref<2x128xf32, #tpu.memory_space<vmem>>) attributes {dimension_semantics = [#tpu.dimension_semantics<parallel>], iteration_bounds = array<i64: 1>, scalar_prefetch = 0 : i64, scratch_operands = 0 : i64, tpu.core_type = #tpu.core_type<tc>, window_params = [{transform_indices = @transform_0, window_bounds = array<i64: 2, 128, 16>}, {pipeline_mode = #tpu.pipeline_mode<synchronous>, transform_indices = @transform_1, window_bounds = array<i64: 128, 256>}, {pipeline_mode = #tpu.pipeline_mode<synchronous>, transform_indices = @transform_2, window_bounds = array<i64: 1, 256>}, {pipeline_mode = #tpu.pipeline_mode<synchronous>, transform_indices = @transform_3, window_bounds = array<i64: 256, 64>}, {pipeline_mode = #tpu.pipeline_mode<synchronous>, transform_indices = @transform_4, window_bounds = array<i64: 1, 64>}, {pipeline_mode = #tpu.pipeline_mode<synchronous>, transform_indices = @transform_5, window_bounds = array<i64: 64, 128>}, {pipeline_mode = #tpu.pipeline_mode<synchronous>, transform_indices = @transform_6, window_bounds = array<i64: 1, 128>}, {transform_indices = @transform_7, window_bounds = array<i64: 2, 128>}]} {
    %c0 = arith.constant 0 : index
    %c0_0 = arith.constant 0 : index
    %c0_1 = arith.constant 0 : index
    %0 = vector.load %arg1[%c0, %c0_0, %c0_1] : memref<2x128x16xbf16, #tpu.memory_space<vmem>>, vector<2x128x16xbf16>
    %1 = arith.extf %0 : vector<2x128x16xbf16> to vector<2x128x16xf32>
    %cst = arith.constant dense<0.000000e+00> : vector<2x128xf32>
    %2 = vector.multi_reduction <add>, %1, %cst [2] : vector<2x128x16xf32> to vector<2x128xf32>
    %c0_2 = arith.constant 0 : index
    %c0_3 = arith.constant 0 : index
    %3 = vector.load %arg2[%c0_2, %c0_3] : memref<128x256xf32, #tpu.memory_space<vmem>>, vector<128x256xf32>
    %cst_4 = arith.constant dense<0.000000e+00> : vector<2x256xf32>
    %4 = tpu.matmul %2, %3, %cst_4 {dimension_numbers = #tpu.dot_dimension_numbers<[1], [0], [0], [1], [0, 0, 1, 1], [], []>} : vector<2x128xf32>, vector<128x256xf32>, vector<2x256xf32> -> vector<2x256xf32>
    %c0_5 = arith.constant 0 : index
    %c0_6 = arith.constant 0 : index
    %5 = vector.load %arg3[%c0_5, %c0_6] : memref<1x256xf32, #tpu.memory_space<vmem>>, vector<1x256xf32>
    %6 = vector.broadcast %5 : vector<1x256xf32> to vector<2x256xf32>
    %7 = arith.addf %4, %6 : vector<2x256xf32>
    %cst_7 = arith.constant 0.000000e+00 : f32
    %8 = vector.broadcast %cst_7 : f32 to vector<2x256xf32>
    %9 = arith.maximumf %7, %8 : vector<2x256xf32>
    %c0_8 = arith.constant 0 : index
    %c0_9 = arith.constant 0 : index
    %10 = vector.load %arg4[%c0_8, %c0_9] : memref<256x64xf32, #tpu.memory_space<vmem>>, vector<256x64xf32>
    %cst_10 = arith.constant dense<0.000000e+00> : vector<2x64xf32>
    %11 = tpu.matmul %9, %10, %cst_10 {dimension_numbers = #tpu.dot_dimension_numbers<[1], [0], [0], [1], [0, 0, 1, 1], [], []>} : vector<2x256xf32>, vector<256x64xf32>, vector<2x64xf32> -> vector<2x64xf32>
    %c0_11 = arith.constant 0 : index
    %c0_12 = arith.constant 0 : index
    %12 = vector.load %arg5[%c0_11, %c0_12] : memref<1x64xf32, #tpu.memory_space<vmem>>, vector<1x64xf32>
    %13 = vector.broadcast %12 : vector<1x64xf32> to vector<2x64xf32>
    %14 = arith.addf %11, %13 : vector<2x64xf32>
    %cst_13 = arith.constant 0.000000e+00 : f32
    %15 = vector.broadcast %cst_13 : f32 to vector<2x64xf32>
    %16 = arith.maximumf %14, %15 : vector<2x64xf32>
    %c0_14 = arith.constant 0 : index
    %c0_15 = arith.constant 0 : index
    %17 = vector.load %arg6[%c0_14, %c0_15] : memref<64x128xf32, #tpu.memory_space<vmem>>, vector<64x128xf32>
    %cst_16 = arith.constant dense<0.000000e+00> : vector<2x128xf32>
    %18 = tpu.matmul %16, %17, %cst_16 {dimension_numbers = #tpu.dot_dimension_numbers<[1], [0], [0], [1], [0, 0, 1, 1], [], []>} : vector<2x64xf32>, vector<64x128xf32>, vector<2x128xf32> -> vector<2x128xf32>
    %c0_17 = arith.constant 0 : index
    %c0_18 = arith.constant 0 : index
    %19 = vector.load %arg7[%c0_17, %c0_18] : memref<1x128xf32, #tpu.memory_space<vmem>>, vector<1x128xf32>
    %20 = vector.broadcast %19 : vector<1x128xf32> to vector<2x128xf32>
    %21 = arith.addf %18, %20 : vector<2x128xf32>
    %c0_19 = arith.constant 0 : index
    %c0_20 = arith.constant 0 : index
    %22 = vector.load %arg8[%c0_19, %c0_20] : memref<2x128xf32, #tpu.memory_space<vmem>>, vector<2x128xf32>
    tpu.vector_store %arg8[%c0_19, %c0_20], %21 {strides = array<i32>} : memref<2x128xf32, #tpu.memory_space<vmem>>, vector<2x128xf32>,
    return
  }
  func.func @transform_0(%arg0: i32) -> (i32, i32, i32) {
    %c0_i32 = arith.constant 0 : i32
    %c0_i32_0 = arith.constant 0 : i32
    %c0_i32_1 = arith.constant 0 : i32
    return %arg0, %c0_i32, %c0_i32_0 : i32, i32, i32
  }
  func.func @transform_1(%arg0: i32) -> (i32, i32) {
    %c0_i32 = arith.constant 0 : i32
    %c0_i32_0 = arith.constant 0 : i32
    %c0_i32_1 = arith.constant 0 : i32
    return %c0_i32, %c0_i32_0 : i32, i32
  }
  func.func @transform_2(%arg0: i32) -> (i32, i32) {
    %c0_i32 = arith.constant 0 : i32
    %c0_i32_0 = arith.constant 0 : i32
    %c0_i32_1 = arith.constant 0 : i32
    return %c0_i32, %c0_i32_0 : i32, i32
  }
  func.func @transform_3(%arg0: i32) -> (i32, i32) {
    %c0_i32 = arith.constant 0 : i32
    %c0_i32_0 = arith.constant 0 : i32
    %c0_i32_1 = arith.constant 0 : i32
    return %c0_i32, %c0_i32_0 : i32, i32
  }
  func.func @transform_4(%arg0: i32) -> (i32, i32) {
    %c0_i32 = arith.constant 0 : i32
    %c0_i32_0 = arith.constant 0 : i32
    %c0_i32_1 = arith.constant 0 : i32
    return %c0_i32, %c0_i32_0 : i32, i32
  }
  func.func @transform_5(%arg0: i32) -> (i32, i32) {
    %c0_i32 = arith.constant 0 : i32
    %c0_i32_0 = arith.constant 0 : i32
    %c0_i32_1 = arith.constant 0 : i32
    return %c0_i32, %c0_i32_0 : i32, i32
  }
  func.func @transform_6(%arg0: i32) -> (i32, i32) {
    %c0_i32 = arith.constant 0 : i32
    %c0_i32_0 = arith.constant 0 : i32
    %c0_i32_1 = arith.constant 0 : i32
    return %c0_i32, %c0_i32_0 : i32, i32
  }
  func.func @transform_7(%arg0: i32) -> (i32, i32) {
    %c0_i32 = arith.constant 0 : i32
    %c0_i32_0 = arith.constant 0 : i32
    return %arg0, %c0_i32 : i32, i32
  }
}

</mosaic_0001>

<llo_original>
// kernel: tpu_custom_call.1
$region0: #{tpu_custom_call.1}
  #allocation0 [shape = 'u32[]', space=smem, size = 0x4, offset = 0x4, fixed_abs, tag = 'smem constant byte address 0x4 - core index']
  #allocation1 [shape = 'u32[72,128]{1,0:T(1,128)}', space=vmem, size = 0x9000, scoped, tag = 'internal scratch']
  %s0 = inlined_call_operand.vmem [shape: bf16[2,128,16], index: 0, kind: input, shape index: {}]
  %s1 = inlined_call_operand.vmem [shape: f32[128,256], index: 1, kind: input, shape index: {}]
  %s2 = inlined_call_operand.vmem [shape: f32[1,256], index: 2, kind: input, shape index: {}]
  %s3 = inlined_call_operand.vmem [shape: f32[256,64], index: 3, kind: input, shape index: {}]
  %s4 = inlined_call_operand.vmem [shape: f32[1,64], index: 4, kind: input, shape index: {}]
  %s5 = inlined_call_operand.vmem [shape: f32[64,128], index: 5, kind: input, shape index: {}]
  %s6 = inlined_call_operand.vmem [shape: f32[1,128], index: 6, kind: input, shape index: {}]
  %s7 = inlined_call_operand.hbm [shape: f32[2,128], index: 7, kind: output, shape index: {}]
  %s8 = sld [smem:[#allocation0]]
  $region38: #{tpu_custom_call.1} parent=0
    _
  %s10 = ssub.s32 1, %s8
  %s11 = scalar_select 0, %s10, %s8
  $region1: #{tpu_custom_call.1} parent=0
    #allocation2 [shape = 'u8[1024]{0}', space=vmem, size = 0x400, scoped, tag = 'output window, operand 0, single buffered']
    #allocation3 [shape = 's32[1]{0}', space=sflag, size = 0x4, scoped, tag = 'scoped memory for tpu_custom_call.1']
    %12 = vsyncpa [#allocation3], 0
    // Predicated region
    $region2: #{tpu_custom_call.1} parent=1 // pred_check
      _
    $region3: #{tpu_custom_call.1} parent=1 // pred_check_branch
      %14 = sbr.rel (0) target = $region5
    $region4: #{tpu_custom_call.1} parent=1 // pred_region
      _
    $region5: #{tpu_custom_call.1} parent=1 // pred_fallthru
      _
    // Predicated region
    $region6: #{tpu_custom_call.1} parent=1 // pred_check
      _
    $region7: #{tpu_custom_call.1} parent=1 // pred_check_branch
      %16 = sbr.rel (0) target = $region9
    $region8: #{tpu_custom_call.1} parent=1 // pred_region
      _
    $region9: #{tpu_custom_call.1} parent=1 // pred_fallthru
      _
    // Predicated region
    $region10: #{tpu_custom_call.1} parent=1 // pred_check
      _
    $region11: #{tpu_custom_call.1} parent=1 // pred_check_branch
      %18 = sbr.rel (0) target = $region13
    $region12: #{tpu_custom_call.1} parent=1 // pred_region
      _
    $region13: #{tpu_custom_call.1} parent=1 // pred_fallthru
      _
    // Predicated region
    $region14: #{tpu_custom_call.1} parent=1 // pred_check
      _
    $region15: #{tpu_custom_call.1} parent=1 // pred_check_branch
      %20 = sbr.rel (0) target = $region17
    $region16: #{tpu_custom_call.1} parent=1 // pred_region
      _
    $region17: #{tpu_custom_call.1} parent=1 // pred_fallthru
      _
    // Predicated region
    $region18: #{tpu_custom_call.1} parent=1 // pred_check
      _
    $region19: #{tpu_custom_call.1} parent=1 // pred_check_branch
      %22 = sbr.rel (0) target = $region21
    $region20: #{tpu_custom_call.1} parent=1 // pred_region
      _
    $region21: #{tpu_custom_call.1} parent=1 // pred_fallthru
      _
    // Predicated region
    $region22: #{tpu_custom_call.1} parent=1 // pred_check
      _
    $region23: #{tpu_custom_call.1} parent=1 // pred_check_branch
      %24 = sbr.rel (0) target = $region25
    $region24: #{tpu_custom_call.1} parent=1 // pred_region
      _
    $region25: #{tpu_custom_call.1} parent=1 // pred_fallthru
      _
    // Predicated region
    $region26: #{tpu_custom_call.1} parent=1 // pred_check
      _
    $region27: #{tpu_custom_call.1} parent=1 // pred_check_branch
      %26 = sbr.rel (0) target = $region29
    $region28: #{tpu_custom_call.1} parent=1 // pred_region
      _
    $region29: #{tpu_custom_call.1} parent=1 // pred_fallthru
      _
    %v27 = vld [vmem:[%s0] sm:$0xf]
    %v28 = vld [vmem:[%s0 + $0x4] sm:$0xf]
    %v29 = vld [vmem:[%s0 + $0x8] sm:$0xf]
    %v30 = vld [vmem:[%s0 + $0xc] sm:$0xf]
    %v31 = vld [vmem:[%s0 + $0x10] sm:$0xf]
    %v32 = vld [vmem:[%s0 + $0x14] sm:$0xf]
    %v33 = vld [vmem:[%s0 + $0x18] sm:$0xf]
    %v34 = vld [vmem:[%s0 + $0x1c] sm:$0xf]
    %v35 = vld [vmem:[%s0 + $0x20] sm:$0xf]
    %v36 = vld [vmem:[%s0 + $0x24] sm:$0xf]
    %v37 = vld [vmem:[%s0 + $0x28] sm:$0xf]
    %v38 = vld [vmem:[%s0 + $0x2c] sm:$0xf]
    %v39 = vld [vmem:[%s0 + $0x30] sm:$0xf]
    %v40 = vld [vmem:[%s0 + $0x34] sm:$0xf]
    %v41 = vld [vmem:[%s0 + $0x38] sm:$0xf]
    %v42 = vld [vmem:[%s0 + $0x3c] sm:$0xf]
    %v43 = vld [vmem:[%s0 + $0x40] sm:$0xf]
    %v44 = vld [vmem:[%s0 + $0x44] sm:$0xf]
    %v45 = vld [vmem:[%s0 + $0x48] sm:$0xf]
    %v46 = vld [vmem:[%s0 + $0x4c] sm:$0xf]
    %v47 = vld [vmem:[%s0 + $0x50] sm:$0xf]
    %v48 = vld [vmem:[%s0 + $0x54] sm:$0xf]
    %v49 = vld [vmem:[%s0 + $0x58] sm:$0xf]
    %v50 = vld [vmem:[%s0 + $0x5c] sm:$0xf]
    %v51 = vld [vmem:[%s0 + $0x60] sm:$0xf]
    %v52 = vld [vmem:[%s0 + $0x64] sm:$0xf]
    %v53 = vld [vmem:[%s0 + $0x68] sm:$0xf]
    %v54 = vld [vmem:[%s0 + $0x6c] sm:$0xf]
    %v55 = vld [vmem:[%s0 + $0x70] sm:$0xf]
    %v56 = vld [vmem:[%s0 + $0x74] sm:$0xf]
    %v57 = vld [vmem:[%s0 + $0x78] sm:$0xf]
    %v58 = vld [vmem:[%s0 + $0x7c] sm:$0xf]
    %v59 = vunpack.c.l.bf16 %v27
    %v60 = vunpack.c.l.bf16 %v28
    %v61 = vunpack.c.l.bf16 %v29
    %v62 = vunpack.c.l.bf16 %v30
    %v63 = vunpack.c.l.bf16 %v31
    %v64 = vunpack.c.l.bf16 %v32
    %v65 = vunpack.c.l.bf16 %v33
    %v66 = vunpack.c.l.bf16 %v34
    %v67 = vunpack.c.l.bf16 %v35
    %v68 = vunpack.c.l.bf16 %v36
    %v69 = vunpack.c.l.bf16 %v37
    %v70 = vunpack.c.l.bf16 %v38
    %v71 = vunpack.c.l.bf16 %v39
    %v72 = vunpack.c.l.bf16 %v40
    %v73 = vunpack.c.l.bf16 %v41
    %v74 = vunpack.c.l.bf16 %v42
    %v75 = vunpack.c.l.bf16 %v43
    %v76 = vunpack.c.l.bf16 %v44
    %v77 = vunpack.c.l.bf16 %v45
    %v78 = vunpack.c.l.bf16 %v46
    %v79 = vunpack.c.l.bf16 %v47
    %v80 = vunpack.c.l.bf16 %v48
    %v81 = vunpack.c.l.bf16 %v49
    %v82 = vunpack.c.l.bf16 %v50
    %v83 = vunpack.c.l.bf16 %v51
    %v84 = vunpack.c.l.bf16 %v52
    %v85 = vunpack.c.l.bf16 %v53
    %v86 = vunpack.c.l.bf16 %v54
    %v87 = vunpack.c.l.bf16 %v55
    %v88 = vunpack.c.l.bf16 %v56
    %v89 = vunpack.c.l.bf16 %v57
    %v90 = vunpack.c.l.bf16 %v58
    %vm91 = vcmask 130048
    %v92 = vsel %vm91, %v59, 0.0
    %93 = vadd.xlane.f32.xlu0 %v92
    %v94 = vpop.xlane.xlu0 %93
    %v95 = vsel %vm91, %v60, 0.0
    %96 = vadd.xlane.f32.xlu0 %v95
    %v97 = vpop.xlane.xlu0 %96
    %v98 = vsel %vm91, %v61, 0.0
    %99 = vadd.xlane.f32.xlu0 %v98
    %v100 = vpop.xlane.xlu0 %99
    %v101 = vsel %vm91, %v62, 0.0
    %102 = vadd.xlane.f32.xlu0 %v101
    %v103 = vpop.xlane.xlu0 %102
    %v104 = vsel %vm91, %v63, 0.0
    %105 = vadd.xlane.f32.xlu0 %v104
    %v106 = vpop.xlane.xlu0 %105
    %v107 = vsel %vm91, %v64, 0.0
    %108 = vadd.xlane.f32.xlu0 %v107
    %v109 = vpop.xlane.xlu0 %108
    %v110 = vsel %vm91, %v65, 0.0
    %111 = vadd.xlane.f32.xlu0 %v110
    %v112 = vpop.xlane.xlu0 %111
    %v113 = vsel %vm91, %v66, 0.0
    %114 = vadd.xlane.f32.xlu0 %v113
    %v115 = vpop.xlane.xlu0 %114
    %v116 = vsel %vm91, %v67, 0.0
    %117 = vadd.xlane.f32.xlu0 %v116
    %v118 = vpop.xlane.xlu0 %117
    %v119 = vsel %vm91, %v68, 0.0
    %120 = vadd.xlane.f32.xlu0 %v119
    %v121 = vpop.xlane.xlu0 %120
    %v122 = vsel %vm91, %v69, 0.0
    %123 = vadd.xlane.f32.xlu0 %v122
    %v124 = vpop.xlane.xlu0 %123
    %v125 = vsel %vm91, %v70, 0.0
    %126 = vadd.xlane.f32.xlu0 %v125
    %v127 = vpop.xlane.xlu0 %126
    %v128 = vsel %vm91, %v71, 0.0
    %129 = vadd.xlane.f32.xlu0 %v128
    %v130 = vpop.xlane.xlu0 %129
    %v131 = vsel %vm91, %v72, 0.0
    %132 = vadd.xlane.f32.xlu0 %v131
    %v133 = vpop.xlane.xlu0 %132
    %v134 = vsel %vm91, %v73, 0.0
    %135 = vadd.xlane.f32.xlu0 %v134
    %v136 = vpop.xlane.xlu0 %135
    %v137 = vsel %vm91, %v74, 0.0
    %138 = vadd.xlane.f32.xlu0 %v137
    %v139 = vpop.xlane.xlu0 %138
    %v140 = vsel %vm91, %v75, 0.0
    %141 = vadd.xlane.f32.xlu0 %v140
    %v142 = vpop.xlane.xlu0 %141
    %v143 = vsel %vm91, %v76, 0.0
    %144 = vadd.xlane.f32.xlu0 %v143
    %v145 = vpop.xlane.xlu0 %144
    %v146 = vsel %vm91, %v77, 0.0
    %147 = vadd.xlane.f32.xlu0 %v146
    %v148 = vpop.xlane.xlu0 %147
    %v149 = vsel %vm91, %v78, 0.0
    %150 = vadd.xlane.f32.xlu0 %v149
    %v151 = vpop.xlane.xlu0 %150
    %v152 = vsel %vm91, %v79, 0.0
    %153 = vadd.xlane.f32.xlu0 %v152
    %v154 = vpop.xlane.xlu0 %153
    %v155 = vsel %vm91, %v80, 0.0
    %156 = vadd.xlane.f32.xlu0 %v155
    %v157 = vpop.xlane.xlu0 %156
    %v158 = vsel %vm91, %v81, 0.0
    %159 = vadd.xlane.f32.xlu0 %v158
    %v160 = vpop.xlane.xlu0 %159
    %v161 = vsel %vm91, %v82, 0.0
    %162 = vadd.xlane.f32.xlu0 %v161
    %v163 = vpop.xlane.xlu0 %162
    %v164 = vsel %vm91, %v83, 0.0
    %165 = vadd.xlane.f32.xlu0 %v164
    %v166 = vpop.xlane.xlu0 %165
    %v167 = vsel %vm91, %v84, 0.0
    %168 = vadd.xlane.f32.xlu0 %v167
    %v169 = vpop.xlane.xlu0 %168
    %v170 = vsel %vm91, %v85, 0.0
    %171 = vadd.xlane.f32.xlu0 %v170
    %v172 = vpop.xlane.xlu0 %171
    %v173 = vsel %vm91, %v86, 0.0
    %174 = vadd.xlane.f32.xlu0 %v173
    %v175 = vpop.xlane.xlu0 %174
    %v176 = vsel %vm91, %v87, 0.0
    %177 = vadd.xlane.f32.xlu0 %v176
    %v178 = vpop.xlane.xlu0 %177
    %v179 = vsel %vm91, %v88, 0.0
    %180 = vadd.xlane.f32.xlu0 %v179
    %v181 = vpop.xlane.xlu0 %180
    %v182 = vsel %vm91, %v89, 0.0
    %183 = vadd.xlane.f32.xlu0 %v182
    %v184 = vpop.xlane.xlu0 %183
    %v185 = vsel %vm91, %v90, 0.0
    %186 = vadd.xlane.f32.xlu0 %v185
    %v187 = vpop.xlane.xlu0 %186
    %v188 = vld [vmem:[%s1] sm:$0xff]
    %v189 = vld [vmem:[%s1 + $0x8] sm:$0xff]
    %v190 = vld [vmem:[%s1 + $0x10] sm:$0xff]
    %v191 = vld [vmem:[%s1 + $0x18] sm:$0xff]
    %v192 = vld [vmem:[%s1 + $0x20] sm:$0xff]
    %v193 = vld [vmem:[%s1 + $0x28] sm:$0xff]
    %v194 = vld [vmem:[%s1 + $0x30] sm:$0xff]
    %v195 = vld [vmem:[%s1 + $0x38] sm:$0xff]
    %v196 = vld [vmem:[%s1 + $0x40] sm:$0xff]
    %v197 = vld [vmem:[%s1 + $0x48] sm:$0xff]
    %v198 = vld [vmem:[%s1 + $0x50] sm:$0xff]
    %v199 = vld [vmem:[%s1 + $0x58] sm:$0xff]
    %v200 = vld [vmem:[%s1 + $0x60] sm:$0xff]
    %v201 = vld [vmem:[%s1 + $0x68] sm:$0xff]
    %v202 = vld [vmem:[%s1 + $0x70] sm:$0xff]
    %v203 = vld [vmem:[%s1 + $0x78] sm:$0xff]
    %v204 = vld [vmem:[%s1 + $0x80] sm:$0xff]
    %v205 = vld [vmem:[%s1 + $0x88] sm:$0xff]
    %v206 = vld [vmem:[%s1 + $0x90] sm:$0xff]
    %v207 = vld [vmem:[%s1 + $0x98] sm:$0xff]
    %v208 = vld [vmem:[%s1 + $0xa0] sm:$0xff]
    %v209 = vld [vmem:[%s1 + $0xa8] sm:$0xff]
    %v210 = vld [vmem:[%s1 + $0xb0] sm:$0xff]
    %v211 = vld [vmem:[%s1 + $0xb8] sm:$0xff]
    %v212 = vld [vmem:[%s1 + $0xc0] sm:$0xff]
    %v213 = vld [vmem:[%s1 + $0xc8] sm:$0xff]
    %v214 = vld [vmem:[%s1 + $0xd0] sm:$0xff]
    %v215 = vld [vmem:[%s1 + $0xd8] sm:$0xff]
    %v216 = vld [vmem:[%s1 + $0xe0] sm:$0xff]
    %v217 = vld [vmem:[%s1 + $0xe8] sm:$0xff]
    %v218 = vld [vmem:[%s1 + $0xf0] sm:$0xff]
    %v219 = vld [vmem:[%s1 + $0xf8] sm:$0xff]
    %v220 = vld [vmem:[%s2] sm:$0x3]
    %v222 = vperm.slane %v220, 0
    %v223 = vperm.slane %v220, 1
    %v258 = vlaneseq
    %v259 = vand.u32 %v258, 127
    %v260 = vperm.slane %v94, %v259
    %v261 = vadd.s32 %v259, 4294967288
    %v262 = vperm.slane %v97, %v261
    %vm263 = vcmask 130112
    %v264 = vsel %vm263, %v262, %v260
    %v265 = vadd.s32 %v259, 4294967280
    %v266 = vperm.slane %v100, %v265
    %vm267 = vcmask 195712
    %v268 = vsel %vm267, %v266, %v264
    %v269 = vadd.s32 %v259, 4294967272
    %v270 = vperm.slane %v103, %v269
    %vm271 = vcmask 261312
    %v272 = vsel %vm271, %v270, %v268
    %v273 = vadd.s32 %v259, 4294967264
    %v274 = vperm.slane %v106, %v273
    %vm275 = vcmask 326912
    %v276 = vsel %vm275, %v274, %v272
    %v277 = vadd.s32 %v259, 4294967256
    %v278 = vperm.slane %v109, %v277
    %vm279 = vcmask 392512
    %v280 = vsel %vm279, %v278, %v276
    %v281 = vadd.s32 %v259, 4294967248
    %v282 = vperm.slane %v112, %v281
    %vm283 = vcmask 458112
    %v284 = vsel %vm283, %v282, %v280
    %v285 = vadd.s32 %v259, 4294967240
    %v286 = vperm.slane %v115, %v285
    %vm287 = vcmask 523712
    %v288 = vsel %vm287, %v286, %v284
    %v289 = vadd.s32 %v259, 4294967232
    %v290 = vperm.slane %v118, %v289
    %vm291 = vcmask 589312
    %v292 = vsel %vm291, %v290, %v288
    %v293 = vadd.s32 %v259, 4294967224
    %v294 = vperm.slane %v121, %v293
    %vm295 = vcmask 654912
    %v296 = vsel %vm295, %v294, %v292
    %v297 = vadd.s32 %v259, 4294967216
    %v298 = vperm.slane %v124, %v297
    %vm299 = vcmask 720512
    %v300 = vsel %vm299, %v298, %v296
    %v301 = vadd.s32 %v259, 4294967208
    %v302 = vperm.slane %v127, %v301
    %vm303 = vcmask 786112
    %v304 = vsel %vm303, %v302, %v300
    %v305 = vadd.s32 %v259, 4294967200
    %v306 = vperm.slane %v130, %v305
    %vm307 = vcmask 851712
    %v308 = vsel %vm307, %v306, %v304
    %v309 = vadd.s32 %v259, 4294967192
    %v310 = vperm.slane %v133, %v309
    %vm311 = vcmask 917312
    %v312 = vsel %vm311, %v310, %v308
    %v313 = vadd.s32 %v259, 4294967184
    %v314 = vperm.slane %v136, %v313
    %vm315 = vcmask 982912
    %v316 = vsel %vm315, %v314, %v312
    %v317 = vadd.s32 %v259, 4294967176
    %v318 = vperm.slane %v139, %v317
    %vm319 = vcmask 1048512
    %v320 = vsel %vm319, %v318, %v316
    %v321 = vperm.slane %v142, %v259
    %v322 = vperm.slane %v145, %v261
    %v323 = vsel %vm263, %v322, %v321
    %v324 = vperm.slane %v148, %v265
    %v325 = vsel %vm267, %v324, %v323
    %v326 = vperm.slane %v151, %v269
    %v327 = vsel %vm271, %v326, %v325
    %v328 = vperm.slane %v154, %v273
    %v329 = vsel %vm275, %v328, %v327
    %v330 = vperm.slane %v157, %v277
    %v331 = vsel %vm279, %v330, %v329
    %v332 = vperm.slane %v160, %v281
    %v333 = vsel %vm283, %v332, %v331
    %v334 = vperm.slane %v163, %v285
    %v335 = vsel %vm287, %v334, %v333
    %v336 = vperm.slane %v166, %v289
    %v337 = vsel %vm291, %v336, %v335
    %v338 = vperm.slane %v169, %v293
    %v339 = vsel %vm295, %v338, %v337
    %v340 = vperm.slane %v172, %v297
    %v341 = vsel %vm299, %v340, %v339
    %v342 = vperm.slane %v175, %v301
    %v343 = vsel %vm303, %v342, %v341
    %v344 = vperm.slane %v178, %v305
    %v345 = vsel %vm307, %v344, %v343
    %v346 = vperm.slane %v181, %v309
    %v347 = vsel %vm311, %v346, %v345
    %v348 = vperm.slane %v184, %v313
    %v349 = vsel %vm315, %v348, %v347
    %v350 = vperm.slane %v187, %v317
    %v351 = vsel %vm319, %v350, %v349
    %vm352 = vcmask 1041409
    %v353 = vsel %vm352, %v351, %v320
    %355 = vmatpush.msra.mxu0 %v218
    %356 = vmatpush.msra.mxu0 %v216
    %357 = vmatpush.msra.mxu0 %v214
    %358 = vmatpush.msra.mxu0 %v212
    %359 = vmatpush.msra.mxu0 %v210
    %360 = vmatpush.msra.mxu0 %v208
    %361 = vmatpush.msra.mxu0 %v206
    %362 = vmatpush.msra.mxu0 %v204
    %363 = vmatpush.msra.mxu0 %v202
    %364 = vmatpush.msra.mxu0 %v200
    %365 = vmatpush.msra.mxu0 %v198
    %366 = vmatpush.msra.mxu0 %v196
    %367 = vmatpush.msra.mxu0 %v194
    %368 = vmatpush.msra.mxu0 %v192
    %369 = vmatpush.msra.mxu0 %v190
    %370 = vmatpush.msra.mxu0 %v188
    %371 = vmatmul.f32.gmra.mxu0 %v353
    %v372 = vpop.f32.mrf.mxu0
    %v373 = vadd.f32 %v222, %v372
    %374 = vdwg.mxu0
    %375 = vmatpush.msra.mxu0 %v219
    %376 = vmatpush.msra.mxu0 %v217
    %377 = vmatpush.msra.mxu0 %v215
    %378 = vmatpush.msra.mxu0 %v213
    %379 = vmatpush.msra.mxu0 %v211
    %380 = vmatpush.msra.mxu0 %v209
    %381 = vmatpush.msra.mxu0 %v207
    %382 = vmatpush.msra.mxu0 %v205
    %383 = vmatpush.msra.mxu0 %v203
    %384 = vmatpush.msra.mxu0 %v201
    %385 = vmatpush.msra.mxu0 %v199
    %386 = vmatpush.msra.mxu0 %v197
    %387 = vmatpush.msra.mxu0 %v195
    %388 = vmatpush.msra.mxu0 %v193
    %389 = vmatpush.msra.mxu0 %v191
    %390 = vmatpush.msra.mxu0 %v189
    %391 = vmatmul.f32.gmra.mxu0 %v353
    %v392 = vpop.f32.mrf.mxu0
    %v393 = vadd.f32 %v223, %v392
    %394 = vdwg.mxu0
    %v395 = vmax.f32 %v373, 0.0
    %v396 = vmax.f32 %v393, 0.0
    %v397 = vld [vmem:[%s3] sm:$0xff]
    %v398 = vld [vmem:[%s3 + $0x8] sm:$0xff]
    %v399 = vld [vmem:[%s3 + $0x10] sm:$0xff]
    %v400 = vld [vmem:[%s3 + $0x18] sm:$0xff]
    %v401 = vld [vmem:[%s3 + $0x20] sm:$0xff]
    %v402 = vld [vmem:[%s3 + $0x28] sm:$0xff]
    %v403 = vld [vmem:[%s3 + $0x30] sm:$0xff]
    %v404 = vld [vmem:[%s3 + $0x38] sm:$0xff]
    %v405 = vld [vmem:[%s3 + $0x40] sm:$0xff]
    %v406 = vld [vmem:[%s3 + $0x48] sm:$0xff]
    %v407 = vld [vmem:[%s3 + $0x50] sm:$0xff]
    %v408 = vld [vmem:[%s3 + $0x58] sm:$0xff]
    %v409 = vld [vmem:[%s3 + $0x60] sm:$0xff]
    %v410 = vld [vmem:[%s3 + $0x68] sm:$0xff]
    %v411 = vld [vmem:[%s3 + $0x70] sm:$0xff]
    %v412 = vld [vmem:[%s3 + $0x78] sm:$0xff]
    %v413 = vld [vmem:[%s3 + $0x80] sm:$0xff]
    %v414 = vld [vmem:[%s3 + $0x88] sm:$0xff]
    %v415 = vld [vmem:[%s3 + $0x90] sm:$0xff]
    %v416 = vld [vmem:[%s3 + $0x98] sm:$0xff]
    %v417 = vld [vmem:[%s3 + $0xa0] sm:$0xff]
    %v418 = vld [vmem:[%s3 + $0xa8] sm:$0xff]
    %v419 = vld [vmem:[%s3 + $0xb0] sm:$0xff]
    %v420 = vld [vmem:[%s3 + $0xb8] sm:$0xff]
    %v421 = vld [vmem:[%s3 + $0xc0] sm:$0xff]
    %v422 = vld [vmem:[%s3 + $0xc8] sm:$0xff]
    %v423 = vld [vmem:[%s3 + $0xd0] sm:$0xff]
    %v424 = vld [vmem:[%s3 + $0xd8] sm:$0xff]
    %v425 = vld [vmem:[%s3 + $0xe0] sm:$0xff]
    %v426 = vld [vmem:[%s3 + $0xe8] sm:$0xff]
    %v427 = vld [vmem:[%s3 + $0xf0] sm:$0xff]
    %v428 = vld [vmem:[%s3 + $0xf8] sm:$0xff]
    %v429 = vld [vmem:[%s4] sm:$0x1]
    %v431 = vperm.slane %v429, 0
    %433 = vmatpush.msra.mxu0 %v412
    %434 = vmatpush.msra.mxu0 %v411
    %435 = vmatpush.msra.mxu0 %v410
    %436 = vmatpush.msra.mxu0 %v409
    %437 = vmatpush.msra.mxu0 %v408
    %438 = vmatpush.msra.mxu0 %v407
    %439 = vmatpush.msra.mxu0 %v406
    %440 = vmatpush.msra.mxu0 %v405
    %441 = vmatpush.msra.mxu0 %v404
    %442 = vmatpush.msra.mxu0 %v403
    %443 = vmatpush.msra.mxu0 %v402
    %444 = vmatpush.msra.mxu0 %v401
    %445 = vmatpush.msra.mxu0 %v400
    %446 = vmatpush.msra.mxu0 %v399
    %447 = vmatpush.msra.mxu0 %v398
    %448 = vmatpush.msra.mxu0 %v397
    %449 = vmatmul.f32.gmra.mxu0 %v395
    %v450 = vpop.f32.mrf.mxu0
    %v451 = vadd.f32 %v431, %v450
    %452 = vdwg.mxu0
    %453 = vmatpush.msra.mxu0 %v428
    %454 = vmatpush.msra.mxu0 %v427
    %455 = vmatpush.msra.mxu0 %v426
    %456 = vmatpush.msra.mxu0 %v425
    %457 = vmatpush.msra.mxu0 %v424
    %458 = vmatpush.msra.mxu0 %v423
    %459 = vmatpush.msra.mxu0 %v422
    %460 = vmatpush.msra.mxu0 %v421
    %461 = vmatpush.msra.mxu0 %v420
    %462 = vmatpush.msra.mxu0 %v419
    %463 = vmatpush.msra.mxu0 %v418
    %464 = vmatpush.msra.mxu0 %v417
    %465 = vmatpush.msra.mxu0 %v416
    %466 = vmatpush.msra.mxu0 %v415
    %467 = vmatpush.msra.mxu0 %v414
    %468 = vmatpush.msra.mxu0 %v413
    %469 = vmatmul.f32.gmra.mxu0 %v396
    %v470 = vpop.f32.mrf.mxu0
    %v471 = vadd.f32 %v451, %v470
    %472 = vdwg.mxu0
    %v473 = vmax.f32 %v471, 0.0
    %v474 = vld [vmem:[%s5] sm:$0xff]
    %v475 = vld [vmem:[%s5 + $0x8] sm:$0xff]
    %v476 = vld [vmem:[%s5 + $0x10] sm:$0xff]
    %v477 = vld [vmem:[%s5 + $0x18] sm:$0xff]
    %v478 = vld [vmem:[%s5 + $0x20] sm:$0xff]
    %v479 = vld [vmem:[%s5 + $0x28] sm:$0xff]
    %v480 = vld [vmem:[%s5 + $0x30] sm:$0xff]
    %v481 = vld [vmem:[%s5 + $0x38] sm:$0xff]
    %v482 = vld [vmem:[%s6] sm:$0x1]
    %v484 = vperm.slane %v482, 0
    %vm486 = vcmask 523264
    %v488 = vsel %vm486, %v473, 0
    %490 = vmatpush.msra.mxu0 0.0
    %491 = vmatpush.msra.mxu0 0.0
    %492 = vmatpush.msra.mxu0 0.0
    %493 = vmatpush.msra.mxu0 0.0
    %494 = vmatpush.msra.mxu0 0.0
    %495 = vmatpush.msra.mxu0 0.0
    %496 = vmatpush.msra.mxu0 0.0
    %497 = vmatpush.msra.mxu0 0.0
    %498 = vmatpush.msra.mxu0 %v481
    %499 = vmatpush.msra.mxu0 %v480
    %500 = vmatpush.msra.mxu0 %v479
    %501 = vmatpush.msra.mxu0 %v478
    %502 = vmatpush.msra.mxu0 %v477
    %503 = vmatpush.msra.mxu0 %v476
    %504 = vmatpush.msra.mxu0 %v475
    %505 = vmatpush.msra.mxu0 %v474
    %506 = vmatmul.f32.gmra.mxu0 %v488
    %v507 = vpop.f32.mrf.mxu0
    %v508 = vadd.f32 %v484, %v507
    %509 = vdwg.mxu0
    %510 = vst [vmem:[#allocation2] sm:$0x3] %v508
    // Predicated region
    $region30: #{tpu_custom_call.1} parent=1 // pred_check
      _
    $region31: #{tpu_custom_call.1} parent=1 // pred_check_branch
      %512 = sbr.rel (0) target = $region33
    $region32: #{tpu_custom_call.1} parent=1 // pred_region
      %514 = vsyncadd [#allocation3], 0
      %s516 = sshll.u32 [#allocation2], 4
      %s517 = int_to_ptr.vmem [resolvable:$true] %s516
      %s518 = sshll.u32 %s7, 4
      %s519 = int_to_ptr.hbm [resolvable:$true] %s518
      %521 = dma.vmem_to_hbm [thread:$0]  %s517, 32, %s519, [#allocation3]
    $region33: #{tpu_custom_call.1} parent=1 // pred_fallthru
      _
    // Predicated region
    $region34: #{tpu_custom_call.1} parent=1 // pred_check
      _
    $region35: #{tpu_custom_call.1} parent=1 // pred_check_branch
      %523 = sbr.rel (0) target = $region37
    $region36: #{tpu_custom_call.1} parent=1 // pred_region
      %525 = dma.done [#allocation3], 32
    $region37: #{tpu_custom_call.1} parent=1 // pred_fallthru
      _
    %526 = vsyncpa [#allocation3], 1

// kernel: tpu_custom_call.1
$region0: #{tpu_custom_call.1}
  #allocation0 [shape = 'u32[]', space=smem, size = 0x4, offset = 0x4, fixed_abs, tag = 'smem constant byte address 0x4 - core index']
  #allocation1 [shape = 'u32[72,128]{1,0:T(1,128)}', space=vmem, size = 0x9000, scoped, tag = 'internal scratch']
  %s0 = inlined_call_operand.vmem [shape: bf16[2,128,16], index: 0, kind: input, shape index: {}]
  %s1 = inlined_call_operand.vmem [shape: f32[128,256], index: 1, kind: input, shape index: {}]
  %s2 = inlined_call_operand.vmem [shape: f32[1,256], index: 2, kind: input, shape index: {}]
  %s3 = inlined_call_operand.vmem [shape: f32[256,64], index: 3, kind: input, shape index: {}]
  %s4 = inlined_call_operand.vmem [shape: f32[1,64], index: 4, kind: input, shape index: {}]
  %s5 = inlined_call_operand.vmem [shape: f32[64,128], index: 5, kind: input, shape index: {}]
  %s6 = inlined_call_operand.vmem [shape: f32[1,128], index: 6, kind: input, shape index: {}]
  %s7 = inlined_call_operand.hbm [shape: f32[2,128], index: 7, kind: output, shape index: {}]
  %s8 = sld [smem:[#allocation0]]
  $region38: #{tpu_custom_call.1} parent=0
    _
  %s10 = ssub.s32 1, %s8
  %s11 = scalar_select 0, %s10, %s8
  $region1: #{tpu_custom_call.1} parent=0
    #allocation2 [shape = 'u8[1024]{0}', space=vmem, size = 0x400, scoped, tag = 'output window, operand 0, single buffered']
    #allocation3 [shape = 's32[1]{0}', space=sflag, size = 0x4, scoped, tag = 'scoped memory for tpu_custom_call.1']
    %12 = vsyncpa [#allocation3], 0
    // Predicated region
    $region2: #{tpu_custom_call.1} parent=1 // pred_check
      _
    $region3: #{tpu_custom_call.1} parent=1 // pred_check_branch
      %14 = sbr.rel (0) target = $region5
    $region4: #{tpu_custom_call.1} parent=1 // pred_region
      _
    $region5: #{tpu_custom_call.1} parent=1 // pred_fallthru
      _
    // Predicated region
    $region6: #{tpu_custom_call.1} parent=1 // pred_check
      _
    $region7: #{tpu_custom_call.1} parent=1 // pred_check_branch
      %16 = sbr.rel (0) target = $region9
    $region8: #{tpu_custom_call.1} parent=1 // pred_region
      _
    $region9: #{tpu_custom_call.1} parent=1 // pred_fallthru
      _
    // Predicated region
    $region10: #{tpu_custom_call.1} parent=1 // pred_check
      _
    $region11: #{tpu_custom_call.1} parent=1 // pred_check_branch
      %18 = sbr.rel (0) target = $region13
    $region12: #{tpu_custom_call.1} parent=1 // pred_region
      _
    $region13: #{tpu_custom_call.1} parent=1 // pred_fallthru
      _
    // Predicated region
    $region14: #{tpu_custom_call.1} parent=1 // pred_check
      _
    $region15: #{tpu_custom_call.1} parent=1 // pred_check_branch
      %20 = sbr.rel (0) target = $region17
    $region16: #{tpu_custom_call.1} parent=1 // pred_region
      _
    $region17: #{tpu_custom_call.1} parent=1 // pred_fallthru
      _
    // Predicated region
    $region18: #{tpu_custom_call.1} parent=1 // pred_check
      _
    $region19: #{tpu_custom_call.1} parent=1 // pred_check_branch
      %22 = sbr.rel (0) target = $region21
    $region20: #{tpu_custom_call.1} parent=1 // pred_region
      _
    $region21: #{tpu_custom_call.1} parent=1 // pred_fallthru
      _
    // Predicated region
    $region22: #{tpu_custom_call.1} parent=1 // pred_check
      _
    $region23: #{tpu_custom_call.1} parent=1 // pred_check_branch
      %24 = sbr.rel (0) target = $region25
    $region24: #{tpu_custom_call.1} parent=1 // pred_region
      _
    $region25: #{tpu_custom_call.1} parent=1 // pred_fallthru
      _
    // Predicated region
    $region26: #{tpu_custom_call.1} parent=1 // pred_check
      _
    $region27: #{tpu_custom_call.1} parent=1 // pred_check_branch
      %26 = sbr.rel (0) target = $region29
    $region28: #{tpu_custom_call.1} parent=1 // pred_region
      _
    $region29: #{tpu_custom_call.1} parent=1 // pred_fallthru
      _
    %v27 = vld [vmem:[%s0] sm:$0xf]
    %v28 = vld [vmem:[%s0 + $0x4] sm:$0xf]
    %v29 = vld [vmem:[%s0 + $0x8] sm:$0xf]
    %v30 = vld [vmem:[%s0 + $0xc] sm:$0xf]
    %v31 = vld [vmem:[%s0 + $0x10] sm:$0xf]
    %v32 = vld [vmem:[%s0 + $0x14] sm:$0xf]
    %v33 = vld [vmem:[%s0 + $0x18] sm:$0xf]
    %v34 = vld [vmem:[%s0 + $0x1c] sm:$0xf]
    %v35 = vld [vmem:[%s0 + $0x20] sm:$0xf]
    %v36 = vld [vmem:[%s0 + $0x24] sm:$0xf]
    %v37 = vld [vmem:[%s0 + $0x28] sm:$0xf]
    %v38 = vld [vmem:[%s0 + $0x2c] sm:$0xf]
    %v39 = vld [vmem:[%s0 + $0x30] sm:$0xf]
    %v40 = vld [vmem:[%s0 + $0x34] sm:$0xf]
    %v41 = vld [vmem:[%s0 + $0x38] sm:$0xf]
    %v42 = vld [vmem:[%s0 + $0x3c] sm:$0xf]
    %v43 = vld [vmem:[%s0 + $0x40] sm:$0xf]
    %v44 = vld [vmem:[%s0 + $0x44] sm:$0xf]
    %v45 = vld [vmem:[%s0 + $0x48] sm:$0xf]
    %v46 = vld [vmem:[%s0 + $0x4c] sm:$0xf]
    %v47 = vld [vmem:[%s0 + $0x50] sm:$0xf]
    %v48 = vld [vmem:[%s0 + $0x54] sm:$0xf]
    %v49 = vld [vmem:[%s0 + $0x58] sm:$0xf]
    %v50 = vld [vmem:[%s0 + $0x5c] sm:$0xf]
    %v51 = vld [vmem:[%s0 + $0x60] sm:$0xf]
    %v52 = vld [vmem:[%s0 + $0x64] sm:$0xf]
    %v53 = vld [vmem:[%s0 + $0x68] sm:$0xf]
    %v54 = vld [vmem:[%s0 + $0x6c] sm:$0xf]
    %v55 = vld [vmem:[%s0 + $0x70] sm:$0xf]
    %v56 = vld [vmem:[%s0 + $0x74] sm:$0xf]
    %v57 = vld [vmem:[%s0 + $0x78] sm:$0xf]
    %v58 = vld [vmem:[%s0 + $0x7c] sm:$0xf]
    %v59 = vunpack.c.l.bf16 %v27
    %v60 = vunpack.c.l.bf16 %v28
    %v61 = vunpack.c.l.bf16 %v29
    %v62 = vunpack.c.l.bf16 %v30
    %v63 = vunpack.c.l.bf16 %v31
    %v64 = vunpack.c.l.bf16 %v32
    %v65 = vunpack.c.l.bf16 %v33
    %v66 = vunpack.c.l.bf16 %v34
    %v67 = vunpack.c.l.bf16 %v35
    %v68 = vunpack.c.l.bf16 %v36
    %v69 = vunpack.c.l.bf16 %v37
    %v70 = vunpack.c.l.bf16 %v38
    %v71 = vunpack.c.l.bf16 %v39
    %v72 = vunpack.c.l.bf16 %v40
    %v73 = vunpack.c.l.bf16 %v41
    %v74 = vunpack.c.l.bf16 %v42
    %v75 = vunpack.c.l.bf16 %v43
    %v76 = vunpack.c.l.bf16 %v44
    %v77 = vunpack.c.l.bf16 %v45
    %v78 = vunpack.c.l.bf16 %v46
    %v79 = vunpack.c.l.bf16 %v47
    %v80 = vunpack.c.l.bf16 %v48
    %v81 = vunpack.c.l.bf16 %v49
    %v82 = vunpack.c.l.bf16 %v50
    %v83 = vunpack.c.l.bf16 %v51
    %v84 = vunpack.c.l.bf16 %v52
    %v85 = vunpack.c.l.bf16 %v53
    %v86 = vunpack.c.l.bf16 %v54
    %v87 = vunpack.c.l.bf16 %v55
    %v88 = vunpack.c.l.bf16 %v56
    %v89 = vunpack.c.l.bf16 %v57
    %v90 = vunpack.c.l.bf16 %v58
    %vm91 = vcmask 130048
    %v92 = vsel %vm91, %v59, 0.0
    %93 = vadd.xlane.f32.xlu0 %v92
    %v94 = vpop.xlane.xlu0 %93
    %v95 = vsel %vm91, %v60, 0.0
    %96 = vadd.xlane.f32.xlu0 %v95
    %v97 = vpop.xlane.xlu0 %96
    %v98 = vsel %vm91, %v61, 0.0
    %99 = vadd.xlane.f32.xlu0 %v98
    %v100 = vpop.xlane.xlu0 %99
    %v101 = vsel %vm91, %v62, 0.0
    %102 = vadd.xlane.f32.xlu0 %v101
    %v103 = vpop.xlane.xlu0 %102
    %v104 = vsel %vm91, %v63, 0.0
    %105 = vadd.xlane.f32.xlu0 %v104
    %v106 = vpop.xlane.xlu0 %105
    %v107 = vsel %vm91, %v64, 0.0
    %108 = vadd.xlane.f32.xlu0 %v107
    %v109 = vpop.xlane.xlu0 %108
    %v110 = vsel %vm91, %v65, 0.0
    %111 = vadd.xlane.f32.xlu0 %v110
    %v112 = vpop.xlane.xlu0 %111
    %v113 = vsel %vm91, %v66, 0.0
    %114 = vadd.xlane.f32.xlu0 %v113
    %v115 = vpop.xlane.xlu0 %114
    %v116 = vsel %vm91, %v67, 0.0
    %117 = vadd.xlane.f32.xlu0 %v116
    %v118 = vpop.xlane.xlu0 %117
    %v119 = vsel %vm91, %v68, 0.0
    %120 = vadd.xlane.f32.xlu0 %v119
    %v121 = vpop.xlane.xlu0 %120
    %v122 = vsel %vm91, %v69, 0.0
    %123 = vadd.xlane.f32.xlu0 %v122
    %v124 = vpop.xlane.xlu0 %123
    %v125 = vsel %vm91, %v70, 0.0
    %126 = vadd.xlane.f32.xlu0 %v125
    %v127 = vpop.xlane.xlu0 %126
    %v128 = vsel %vm91, %v71, 0.0
    %129 = vadd.xlane.f32.xlu0 %v128
    %v130 = vpop.xlane.xlu0 %129
    %v131 = vsel %vm91, %v72, 0.0
    %132 = vadd.xlane.f32.xlu0 %v131
    %v133 = vpop.xlane.xlu0 %132
    %v134 = vsel %vm91, %v73, 0.0
    %135 = vadd.xlane.f32.xlu0 %v134
    %v136 = vpop.xlane.xlu0 %135
    %v137 = vsel %vm91, %v74, 0.0
    %138 = vadd.xlane.f32.xlu0 %v137
    %v139 = vpop.xlane.xlu0 %138
    %v140 = vsel %vm91, %v75, 0.0
    %141 = vadd.xlane.f32.xlu0 %v140
    %v142 = vpop.xlane.xlu0 %141
    %v143 = vsel %vm91, %v76, 0.0
    %144 = vadd.xlane.f32.xlu0 %v143
    %v145 = vpop.xlane.xlu0 %144
    %v146 = vsel %vm91, %v77, 0.0
    %147 = vadd.xlane.f32.xlu0 %v146
    %v148 = vpop.xlane.xlu0 %147
    %v149 = vsel %vm91, %v78, 0.0
    %150 = vadd.xlane.f32.xlu0 %v149
    %v151 = vpop.xlane.xlu0 %150
    %v152 = vsel %vm91, %v79, 0.0
    %153 = vadd.xlane.f32.xlu0 %v152
    %v154 = vpop.xlane.xlu0 %153
    %v155 = vsel %vm91, %v80, 0.0
    %156 = vadd.xlane.f32.xlu0 %v155
    %v157 = vpop.xlane.xlu0 %156
    %v158 = vsel %vm91, %v81, 0.0
    %159 = vadd.xlane.f32.xlu0 %v158
    %v160 = vpop.xlane.xlu0 %159
    %v161 = vsel %vm91, %v82, 0.0
    %162 = vadd.xlane.f32.xlu0 %v161
    %v163 = vpop.xlane.xlu0 %162
    %v164 = vsel %vm91, %v83, 0.0
    %165 = vadd.xlane.f32.xlu0 %v164
    %v166 = vpop.xlane.xlu0 %165
    %v167 = vsel %vm91, %v84, 0.0
    %168 = vadd.xlane.f32.xlu0 %v167
    %v169 = vpop.xlane.xlu0 %168
    %v170 = vsel %vm91, %v85, 0.0
    %171 = vadd.xlane.f32.xlu0 %v170
    %v172 = vpop.xlane.xlu0 %171
    %v173 = vsel %vm91, %v86, 0.0
    %174 = vadd.xlane.f32.xlu0 %v173
    %v175 = vpop.xlane.xlu0 %174
    %v176 = vsel %vm91, %v87, 0.0
    %177 = vadd.xlane.f32.xlu0 %v176
    %v178 = vpop.xlane.xlu0 %177
    %v179 = vsel %vm91, %v88, 0.0
    %180 = vadd.xlane.f32.xlu0 %v179
    %v181 = vpop.xlane.xlu0 %180
    %v182 = vsel %vm91, %v89, 0.0
    %183 = vadd.xlane.f32.xlu0 %v182
    %v184 = vpop.xlane.xlu0 %183
    %v185 = vsel %vm91, %v90, 0.0
    %186 = vadd.xlane.f32.xlu0 %v185
    %v187 = vpop.xlane.xlu0 %186
    %v188 = vld [vmem:[%s1] sm:$0xff]
    %v189 = vld [vmem:[%s1 + $0x8] sm:$0xff]
    %v190 = vld [vmem:[%s1 + $0x10] sm:$0xff]
    %v191 = vld [vmem:[%s1 + $0x18] sm:$0xff]
    %v192 = vld [vmem:[%s1 + $0x20] sm:$0xff]
    %v193 = vld [vmem:[%s1 + $0x28] sm:$0xff]
    %v194 = vld [vmem:[%s1 + $0x30] sm:$0xff]
    %v195 = vld [vmem:[%s1 + $0x38] sm:$0xff]
    %v196 = vld [vmem:[%s1 + $0x40] sm:$0xff]
    %v197 = vld [vmem:[%s1 + $0x48] sm:$0xff]
    %v198 = vld [vmem:[%s1 + $0x50] sm:$0xff]
    %v199 = vld [vmem:[%s1 + $0x58] sm:$0xff]
    %v200 = vld [vmem:[%s1 + $0x60] sm:$0xff]
    %v201 = vld [vmem:[%s1 + $0x68] sm:$0xff]
    %v202 = vld [vmem:[%s1 + $0x70] sm:$0xff]
    %v203 = vld [vmem:[%s1 + $0x78] sm:$0xff]
    %v204 = vld [vmem:[%s1 + $0x80] sm:$0xff]
    %v205 = vld [vmem:[%s1 + $0x88] sm:$0xff]
    %v206 = vld [vmem:[%s1 + $0x90] sm:$0xff]
    %v207 = vld [vmem:[%s1 + $0x98] sm:$0xff]
    %v208 = vld [vmem:[%s1 + $0xa0] sm:$0xff]
    %v209 = vld [vmem:[%s1 + $0xa8] sm:$0xff]
    %v210 = vld [vmem:[%s1 + $0xb0] sm:$0xff]
    %v211 = vld [vmem:[%s1 + $0xb8] sm:$0xff]
    %v212 = vld [vmem:[%s1 + $0xc0] sm:$0xff]
    %v213 = vld [vmem:[%s1 + $0xc8] sm:$0xff]
    %v214 = vld [vmem:[%s1 + $0xd0] sm:$0xff]
    %v215 = vld [vmem:[%s1 + $0xd8] sm:$0xff]
    %v216 = vld [vmem:[%s1 + $0xe0] sm:$0xff]
    %v217 = vld [vmem:[%s1 + $0xe8] sm:$0xff]
    %v218 = vld [vmem:[%s1 + $0xf0] sm:$0xff]
    %v219 = vld [vmem:[%s1 + $0xf8] sm:$0xff]
    %v220 = vld [vmem:[%s2] sm:$0x3]
    %v222 = vperm.slane %v220, 0
    %v223 = vperm.slane %v220, 1
    %v258 = vlaneseq
    %v259 = vand.u32 %v258, 127
    %v260 = vperm.slane %v94, %v259
    %v261 = vadd.s32 %v259, 4294967288
    %v262 = vperm.slane %v97, %v261
    %vm263 = vcmask 130112
    %v264 = vsel %vm263, %v262, %v260
    %v265 = vadd.s32 %v259, 4294967280
    %v266 = vperm.slane %v100, %v265
    %vm267 = vcmask 195712
    %v268 = vsel %vm267, %v266, %v264
    %v269 = vadd.s32 %v259, 4294967272
    %v270 = vperm.slane %v103, %v269
    %vm271 = vcmask 261312
    %v272 = vsel %vm271, %v270, %v268
    %v273 = vadd.s32 %v259, 4294967264
    %v274 = vperm.slane %v106, %v273
    %vm275 = vcmask 326912
    %v276 = vsel %vm275, %v274, %v272
    %v277 = vadd.s32 %v259, 4294967256
    %v278 = vperm.slane %v109, %v277
    %vm279 = vcmask 392512
    %v280 = vsel %vm279, %v278, %v276
    %v281 = vadd.s32 %v259, 4294967248
    %v282 = vperm.slane %v112, %v281
    %vm283 = vcmask 458112
    %v284 = vsel %vm283, %v282, %v280
    %v285 = vadd.s32 %v259, 4294967240
    %v286 = vperm.slane %v115, %v285
    %vm287 = vcmask 523712
    %v288 = vsel %vm287, %v286, %v284
    %v289 = vadd.s32 %v259, 4294967232
    %v290 = vperm.slane %v118, %v289
    %vm291 = vcmask 589312
    %v292 = vsel %vm291, %v290, %v288
    %v293 = vadd.s32 %v259, 4294967224
    %v294 = vperm.slane %v121, %v293
    %vm295 = vcmask 654912
    %v296 = vsel %vm295, %v294, %v292
    %v297 = vadd.s32 %v259, 4294967216
    %v298 = vperm.slane %v124, %v297
    %vm299 = vcmask 720512
    %v300 = vsel %vm299, %v298, %v296
    %v301 = vadd.s32 %v259, 4294967208
    %v302 = vperm.slane %v127, %v301
    %vm303 = vcmask 786112
    %v304 = vsel %vm303, %v302, %v300
    %v305 = vadd.s32 %v259, 4294967200
    %v306 = vperm.slane %v130, %v305
    %vm307 = vcmask 851712
    %v308 = vsel %vm307, %v306, %v304
    %v309 = vadd.s32 %v259, 4294967192
    %v310 = vperm.slane %v133, %v309
    %vm311 = vcmask 917312
    %v312 = vsel %vm311, %v310, %v308
    %v313 = vadd.s32 %v259, 4294967184
    %v314 = vperm.slane %v136, %v313
    %vm315 = vcmask 982912
    %v316 = vsel %vm315, %v314, %v312
    %v317 = vadd.s32 %v259, 4294967176
    %v318 = vperm.slane %v139, %v317
    %vm319 = vcmask 1048512
    %v320 = vsel %vm319, %v318, %v316
    %v321 = vperm.slane %v142, %v259
    %v322 = vperm.slane %v145, %v261
    %v323 = vsel %vm263, %v322, %v321
    %v324 = vperm.slane %v148, %v265
    %v325 = vsel %vm267, %v324, %v323
    %v326 = vperm.slane %v151, %v269
    %v327 = vsel %vm271, %v326, %v325
    %v328 = vperm.slane %v154, %v273
    %v329 = vsel %vm275, %v328, %v327
    %v330 = vperm.slane %v157, %v277
    %v331 = vsel %vm279, %v330, %v329
    %v332 = vperm.slane %v160, %v281
    %v333 = vsel %vm283, %v332, %v331
    %v334 = vperm.slane %v163, %v285
    %v335 = vsel %vm287, %v334, %v333
    %v336 = vperm.slane %v166, %v289
    %v337 = vsel %vm291, %v336, %v335
    %v338 = vperm.slane %v169, %v293
    %v339 = vsel %vm295, %v338, %v337
    %v340 = vperm.slane %v172, %v297
    %v341 = vsel %vm299, %v340, %v339
    %v342 = vperm.slane %v175, %v301
    %v343 = vsel %vm303, %v342, %v341
    %v344 = vperm.slane %v178, %v305
    %v345 = vsel %vm307, %v344, %v343
    %v346 = vperm.slane %v181, %v309
    %v347 = vsel %vm311, %v346, %v345
    %v348 = vperm.slane %v184, %v313
    %v349 = vsel %vm315, %v348, %v347
    %v350 = vperm.slane %v187, %v317
    %v351 = vsel %vm319, %v350, %v349
    %vm352 = vcmask 1041409
    %v353 = vsel %vm352, %v351, %v320
    %355 = vmatpush.msra.mxu0 %v218
    %356 = vmatpush.msra.mxu0 %v216
    %357 = vmatpush.msra.mxu0 %v214
    %358 = vmatpush.msra.mxu0 %v212
    %359 = vmatpush.msra.mxu0 %v210
    %360 = vmatpush.msra.mxu0 %v208
    %361 = vmatpush.msra.mxu0 %v206
    %362 = vmatpush.msra.mxu0 %v204
    %363 = vmatpush.msra.mxu0 %v202
    %364 = vmatpush.msra.mxu0 %v200
    %365 = vmatpush.msra.mxu0 %v198
    %366 = vmatpush.msra.mxu0 %v196
    %367 = vmatpush.msra.mxu0 %v194
    %368 = vmatpush.msra.mxu0 %v192
    %369 = vmatpush.msra.mxu0 %v190
    %370 = vmatpush.msra.mxu0 %v188
    %371 = vmatmul.f32.gmra.mxu0 %v353
    %v372 = vpop.f32.mrf.mxu0
    %v373 = vadd.f32 %v222, %v372
    %374 = vdwg.mxu0
    %375 = vmatpush.msra.mxu0 %v219
    %376 = vmatpush.msra.mxu0 %v217
    %377 = vmatpush.msra.mxu0 %v215
    %378 = vmatpush.msra.mxu0 %v213
    %379 = vmatpush.msra.mxu0 %v211
    %380 = vmatpush.msra.mxu0 %v209
    %381 = vmatpush.msra.mxu0 %v207
    %382 = vmatpush.msra.mxu0 %v205
    %383 = vmatpush.msra.mxu0 %v203
    %384 = vmatpush.msra.mxu0 %v201
    %385 = vmatpush.msra.mxu0 %v199
    %386 = vmatpush.msra.mxu0 %v197
    %387 = vmatpush.msra.mxu0 %v195
    %388 = vmatpush.msra.mxu0 %v193
    %389 = vmatpush.msra.mxu0 %v191
    %390 = vmatpush.msra.mxu0 %v189
    %391 = vmatmul.f32.gmra.mxu0 %v353
    %v392 = vpop.f32.mrf.mxu0
    %v393 = vadd.f32 %v223, %v392
    %394 = vdwg.mxu0
    %v395 = vmax.f32 %v373, 0.0
    %v396 = vmax.f32 %v393, 0.0
    %v397 = vld [vmem:[%s3] sm:$0xff]
    %v398 = vld [vmem:[%s3 + $0x8] sm:$0xff]
    %v399 = vld [vmem:[%s3 + $0x10] sm:$0xff]
    %v400 = vld [vmem:[%s3 + $0x18] sm:$0xff]
    %v401 = vld [vmem:[%s3 + $0x20] sm:$0xff]
    %v402 = vld [vmem:[%s3 + $0x28] sm:$0xff]
    %v403 = vld [vmem:[%s3 + $0x30] sm:$0xff]
    %v404 = vld [vmem:[%s3 + $0x38] sm:$0xff]
    %v405 = vld [vmem:[%s3 + $0x40] sm:$0xff]
    %v406 = vld [vmem:[%s3 + $0x48] sm:$0xff]
    %v407 = vld [vmem:[%s3 + $0x50] sm:$0xff]
    %v408 = vld [vmem:[%s3 + $0x58] sm:$0xff]
    %v409 = vld [vmem:[%s3 + $0x60] sm:$0xff]
    %v410 = vld [vmem:[%s3 + $0x68] sm:$0xff]
    %v411 = vld [vmem:[%s3 + $0x70] sm:$0xff]
    %v412 = vld [vmem:[%s3 + $0x78] sm:$0xff]
    %v413 = vld [vmem:[%s3 + $0x80] sm:$0xff]
    %v414 = vld [vmem:[%s3 + $0x88] sm:$0xff]
    %v415 = vld [vmem:[%s3 + $0x90] sm:$0xff]
    %v416 = vld [vmem:[%s3 + $0x98] sm:$0xff]
    %v417 = vld [vmem:[%s3 + $0xa0] sm:$0xff]
    %v418 = vld [vmem:[%s3 + $0xa8] sm:$0xff]
    %v419 = vld [vmem:[%s3 + $0xb0] sm:$0xff]
    %v420 = vld [vmem:[%s3 + $0xb8] sm:$0xff]
    %v421 = vld [vmem:[%s3 + $0xc0] sm:$0xff]
    %v422 = vld [vmem:[%s3 + $0xc8] sm:$0xff]
    %v423 = vld [vmem:[%s3 + $0xd0] sm:$0xff]
    %v424 = vld [vmem:[%s3 + $0xd8] sm:$0xff]
    %v425 = vld [vmem:[%s3 + $0xe0] sm:$0xff]
    %v426 = vld [vmem:[%s3 + $0xe8] sm:$0xff]
    %v427 = vld [vmem:[%s3 + $0xf0] sm:$0xff]
    %v428 = vld [vmem:[%s3 + $0xf8] sm:$0xff]
    %v429 = vld [vmem:[%s4] sm:$0x1]
    %v431 = vperm.slane %v429, 0
    %433 = vmatpush.msra.mxu0 %v412
    %434 = vmatpush.msra.mxu0 %v411
    %435 = vmatpush.msra.mxu0 %v410
    %436 = vmatpush.msra.mxu0 %v409
    %437 = vmatpush.msra.mxu0 %v408
    %438 = vmatpush.msra.mxu0 %v407
    %439 = vmatpush.msra.mxu0 %v406
    %440 = vmatpush.msra.mxu0 %v405
    %441 = vmatpush.msra.mxu0 %v404
    %442 = vmatpush.msra.mxu0 %v403
    %443 = vmatpush.msra.mxu0 %v402
    %444 = vmatpush.msra.mxu0 %v401
    %445 = vmatpush.msra.mxu0 %v400
    %446 = vmatpush.msra.mxu0 %v399
    %447 = vmatpush.msra.mxu0 %v398
    %448 = vmatpush.msra.mxu0 %v397
    %449 = vmatmul.f32.gmra.mxu0 %v395
    %v450 = vpop.f32.mrf.mxu0
    %v451 = vadd.f32 %v431, %v450
    %452 = vdwg.mxu0
    %453 = vmatpush.msra.mxu0 %v428
    %454 = vmatpush.msra.mxu0 %v427
    %455 = vmatpush.msra.mxu0 %v426
    %456 = vmatpush.msra.mxu0 %v425
    %457 = vmatpush.msra.mxu0 %v424
    %458 = vmatpush.msra.mxu0 %v423
    %459 = vmatpush.msra.mxu0 %v422
    %460 = vmatpush.msra.mxu0 %v421
    %461 = vmatpush.msra.mxu0 %v420
    %462 = vmatpush.msra.mxu0 %v419
    %463 = vmatpush.msra.mxu0 %v418
    %464 = vmatpush.msra.mxu0 %v417
    %465 = vmatpush.msra.mxu0 %v416
    %466 = vmatpush.msra.mxu0 %v415
    %467 = vmatpush.msra.mxu0 %v414
    %468 = vmatpush.msra.mxu0 %v413
    %469 = vmatmul.f32.gmra.mxu0 %v396
    %v470 = vpop.f32.mrf.mxu0
    %v471 = vadd.f32 %v451, %v470
    %472 = vdwg.mxu0
    %v473 = vmax.f32 %v471, 0.0
    %v474 = vld [vmem:[%s5] sm:$0xff]
    %v475 = vld [vmem:[%s5 + $0x8] sm:$0xff]
    %v476 = vld [vmem:[%s5 + $0x10] sm:$0xff]
    %v477 = vld [vmem:[%s5 + $0x18] sm:$0xff]
    %v478 = vld [vmem:[%s5 + $0x20] sm:$0xff]
    %v479 = vld [vmem:[%s5 + $0x28] sm:$0xff]
    %v480 = vld [vmem:[%s5 + $0x30] sm:$0xff]
    %v481 = vld [vmem:[%s5 + $0x38] sm:$0xff]
    %v482 = vld [vmem:[%s6] sm:$0x1]
    %v484 = vperm.slane %v482, 0
    %vm486 = vcmask 523264
    %v488 = vsel %vm486, %v473, 0
    %490 = vmatpush.msra.mxu0 0.0
    %491 = vmatpush.msra.mxu0 0.0
    %492 = vmatpush.msra.mxu0 0.0
    %493 = vmatpush.msra.mxu0 0.0
    %494 = vmatpush.msra.mxu0 0.0
    %495 = vmatpush.msra.mxu0 0.0
    %496 = vmatpush.msra.mxu0 0.0
    %497 = vmatpush.msra.mxu0 0.0
    %498 = vmatpush.msra.mxu0 %v481
    %499 = vmatpush.msra.mxu0 %v480
    %500 = vmatpush.msra.mxu0 %v479
    %501 = vmatpush.msra.mxu0 %v478
    %502 = vmatpush.msra.mxu0 %v477
    %503 = vmatpush.msra.mxu0 %v476
    %504 = vmatpush.msra.mxu0 %v475
    %505 = vmatpush.msra.mxu0 %v474
    %506 = vmatmul.f32.gmra.mxu0 %v488
    %v507 = vpop.f32.mrf.mxu0
    %v508 = vadd.f32 %v484, %v507
    %509 = vdwg.mxu0
    %510 = vst [vmem:[#allocation2] sm:$0x3] %v508
    // Predicated region
    $region30: #{tpu_custom_call.1} parent=1 // pred_check
      _
    $region31: #{tpu_custom_call.1} parent=1 // pred_check_branch
      %512 = sbr.rel (0) target = $region33
    $region32: #{tpu_custom_call.1} parent=1 // pred_region
      %514 = vsyncadd [#allocation3], 0
      %s516 = sshll.u32 [#allocation2], 4
      %s517 = int_to_ptr.vmem [resolvable:$true] %s516
      %s518 = sshll.u32 %s7, 4
      %s519 = int_to_ptr.hbm [resolvable:$true] %s518
      %521 = dma.vmem_to_hbm [thread:$0]  %s517, 32, %s519, [#allocation3]
    $region33: #{tpu_custom_call.1} parent=1 // pred_fallthru
      _
    // Predicated region
    $region34: #{tpu_custom_call.1} parent=1 // pred_check
      _
    $region35: #{tpu_custom_call.1} parent=1 // pred_check_branch
      %523 = sbr.rel (0) target = $region37
    $region36: #{tpu_custom_call.1} parent=1 // pred_region
      %525 = dma.done [#allocation3], 32
    $region37: #{tpu_custom_call.1} parent=1 // pred_fallthru
      _
    %526 = vsyncpa [#allocation3], 1

</llo_original>
